<compile_context>
chip_gen: v7x
topology: tpu7x:2x2x1
jax: 0.10.0
libtpu: 0.0.40
codegen_flags: <defaults>
</compile_context>

<pallas_src>
import jax
import jax.numpy as jnp
from jax import lax
from jax.experimental import pallas as pl
from jax.experimental.pallas import tpu as pltpu


# ----------------------------------------------------------------------------
# Fused forward kernel
# ----------------------------------------------------------------------------
def fused_forward_kernel(feat_ref, feat_a_ref, adj_ref, mask_ref,
                         w1_ref, b1_ref, w2_ref, b2_ref, wd_ref, bd_ref,
                         emb_ref, scores_ref):
    f32 = jnp.float32
    bf16 = jnp.bfloat16
    n = adj_ref.shape[0]
    in_dim = feat_ref.shape[1]
    hidden = w1_ref.shape[1]
    d = w2_ref.shape[1]

    # ---- GCN normalization, folded (A_hat never materialized) --------------
    # adjacency arrives pre-binarized as bf16 0/1 (dense_to_sparse semantics).
    a_bf = adj_ref[...]
    # degree via MXU mat-vec: exact f32 accumulation, keeps the N^2 reduction
    # off the (2-unit) XLU.
    deg = jnp.dot(a_bf, jnp.ones((n, 1), bf16),
                  preferred_element_type=f32) + 1.0        # rowsum(A) + self loop
    dinv = lax.rsqrt(deg)                                  # (n, 1)  D^{-1/2}
    dinv2 = dinv * dinv

    def aggregate(m):
        # A_hat @ m  ==  dinv * (A_bin @ (dinv * m)) + dinv^2 * m
        ms = (dinv * m).astype(bf16)
        return dinv * jnp.dot(a_bf, ms, preferred_element_type=f32) + dinv2 * m

    # ---- layer 1 (dropout == identity, inference) ---------------------------
    w1 = w1_ref[...]                                       # bf16 (in, hidden)
    b1 = b1_ref[...]                                       # f32  (1, hidden)
    if in_dim < hidden:
        # aggregate first: the N^2 matmul runs at lane width 2*in, not 2*hidden.
        ax_cat = aggregate(jnp.concatenate(
            [feat_ref[...], feat_a_ref[...]], axis=1))     # (n, 2*in) f32
        # split once (single misaligned lane slice), stack on sublanes.
        ax_stack = jnp.concatenate(
            [ax_cat[:, :in_dim], ax_cat[:, in_dim:]], axis=0)   # (2n, in)
        h_stack = jnp.maximum(
            jnp.dot(ax_stack.astype(bf16), w1, preferred_element_type=f32) + b1,
            0.0)                                            # (2n, hidden) f32
    else:
        # project first (the usual GCN order) when input_dim >= hidden.
        x_stack = jnp.concatenate([feat_ref[...], feat_a_ref[...]], axis=0)
        xw_stack = jnp.dot(x_stack.astype(bf16), w1, preferred_element_type=f32)
        xw_cat = jnp.concatenate([xw_stack[:n], xw_stack[n:]], axis=1)
        h_cat = jnp.maximum(
            aggregate(xw_cat) + jnp.concatenate([b1, b1], axis=1), 0.0)
        h_stack = jnp.concatenate(
            [h_cat[:, :hidden], h_cat[:, hidden:]], axis=0)  # aligned split

    # ---- layer 2 -------------------------------------------------------------
    zw_stack = jnp.dot(h_stack.astype(bf16), w2_ref[...],
                       preferred_element_type=f32)           # (2n, d) f32
    zw_cat = jnp.concatenate([zw_stack[:n], zw_stack[n:]], axis=1)   # (n, 2d)
    b2 = b2_ref[...]
    emb_cat = aggregate(zw_cat) + jnp.concatenate([b2, b2], axis=1)  # (n, 2d)
    e1 = emb_cat[:, :d]          # emb    (lane-aligned slice)
    e2 = emb_cat[:, d:]          # emb_a  (one lane rotation, paid once)
    emb_ref[...] = e1            # only emb goes back to HBM; emb_a stays in VMEM

    # ---- AvgReadout + L2-normalize + sigmoid (both graphs, one matmul) ------
    # The 1/row_sum mean scale is a positive per-row scalar that cancels in the
    # L2 normalization below, so it is dropped (no XLU rowsum, no reciprocal).
    ge_cat = jnp.dot(mask_ref[...], emb_cat.astype(bf16),
                     preferred_element_type=f32)             # (n, 2d) f32

    def norm_sigmoid(x):
        nsq = jnp.sum(x * x, axis=1, keepdims=True)
        return jax.nn.sigmoid(x * lax.rsqrt(jnp.maximum(nsq, 1e-24)))

    g1 = norm_sigmoid(ge_cat[:, :d])                         # from emb
    g2 = norm_sigmoid(ge_cat[:, d:])                         # from emb_a

    # ---- bilinear discriminator (both calls, one fused MXU matmul) ----------
    # wd holds W[0].T so t[i,j] = sum_k g[i,k] * W[0][j,k].
    g_stack = jnp.concatenate([g1, g2], axis=0)              # (2n, d)
    t_stack = jnp.dot(g_stack.astype(bf16), wd_ref[...],
                      preferred_element_type=f32)            # (2n, d) f32
    t1 = t_stack[:n]                                         # sublane slice (free)
    t2 = t_stack[n:]
    bd = bd_ref[0, 0]                                        # scalar from SMEM
    sc1 = jnp.sum(e1 * t1, axis=1, keepdims=True) + bd       # ret   col 0
    sc2 = jnp.sum(e2 * t1, axis=1, keepdims=True) + bd       # ret   col 1
    sc1a = jnp.sum(e2 * t2, axis=1, keepdims=True) + bd      # ret_a col 0
    sc2a = jnp.sum(e1 * t2, axis=1, keepdims=True) + bd      # ret_a col 1

    # one (n, 4) store; no (n,1)->(1,n) relayouts.
    scores_ref[...] = jnp.concatenate([sc1, sc2, sc1a, sc2a], axis=1)


# ----------------------------------------------------------------------------
# Wrapper: one pallas_call for the whole forward
# ----------------------------------------------------------------------------
def _full_spec(shape):
    nd = len(shape)
    return pl.BlockSpec(shape, lambda i, _nd=nd: (0,) * _nd)


def _vmem_limit_bytes(frac=0.75, fallback=64 * 1024 * 1024):
    # ~96 MiB on v5e/v6e (128 MiB physical), ~48 MiB on v7x (64 MiB physical):
    # leaves headroom for compiler scratch and pipeline double-buffers.
    try:
        return int(pltpu.get_tpu_info().vmem_capacity_bytes * frac)
    except Exception:
        return fallback


def omics2_encoder_forward(params, feat, feat_a, adj, graph_neigh):
    n = adj.shape[0]
    d = params["w2"].shape[1]
    f32 = jnp.float32
    bf16 = jnp.bfloat16

    # N^2 operands narrowed in HBM: dense_to_sparse drops edge weights, so
    # binarization IS the reference semantics for adj; the SpaMI neighbourhood
    # mask is 0/1 so the bf16 cast is exact.
    adj_bin = (adj != 0).astype(bf16)
    mask_bf = graph_neigh.astype(bf16)

    args = (feat.astype(f32), feat_a.astype(f32), adj_bin, mask_bf,
            params["w1"].astype(bf16), params["b1"].astype(f32),
            params["w2"].astype(bf16), params["b2"].astype(f32),
            params["wd"].astype(bf16), params["bd"].astype(f32))

    out_shape = (jax.ShapeDtypeStruct((n, d), f32),   # emb only (emb_a unused)
                 jax.ShapeDtypeStruct((n, 4), f32))   # [sc1 sc2 sc1a sc2a]

    in_specs = [_full_spec(a.shape) for a in args[:-1]]
    in_specs.append(pl.BlockSpec(memory_space=pltpu.MemorySpace.SMEM))  # bd scalar

    emb, scores = pl.pallas_call(
        fused_forward_kernel,
        out_shape=out_shape,
        grid=(1,),
        in_specs=in_specs,
        out_specs=(_full_spec((n, d)), _full_spec((n, 4))),
        compiler_params=pltpu.CompilerParams(
            dimension_semantics=("arbitrary",),
            vmem_limit_bytes=_vmem_limit_bytes()),
    )(*args)

    ret = scores[:, 0:2]      # == torch.cat((sc_1, sc_2), 1)
    ret_a = scores[:, 2:4]
    return emb, ret, ret_a


# ----------------------------------------------------------------------------
# Parameters (deterministic, xavier/glorot-style)
# ----------------------------------------------------------------------------
def init_params(key, input_dim, hidden, out_dim):
    k1, k2, k3 = jax.random.split(key, 3)

    def glorot(k, fan_in, fan_out, shape):
        lim = jnp.sqrt(6.0 / (fan_in + fan_out))
        return jax.random.uniform(k, shape, jnp.float32, -lim, lim)

    return {
        # GCN weights stored as (in, out) == PyTorch lin.weight.T
        "w1": glorot(k1, input_dim, hidden, (input_dim, hidden)),
        "b1": jnp.zeros((1, hidden), jnp.float32),
        "w2": glorot(k2, hidden, out_dim, (hidden, out_dim)),
        "b2": jnp.zeros((1, out_dim), jnp.float32),
        # Discriminator bilinear weight stored as W[0].T  (n_h, n_h)
        "wd": glorot(k3, out_dim, out_dim, (out_dim, out_dim)),
        "bd": jnp.zeros((1, 1), jnp.float32),
    }


# ----------------------------------------------------------------------------
if __name__ == "__main__":
    key = jax.random.PRNGKey(0)
    k_feat, k_feat_a, k_adj, k_param = jax.random.split(key, 4)

    N, INPUT_DIM, HIDDEN, OUT_DIM = 16, 32, 256, 32

    feat = jax.random.normal(k_feat, (N, INPUT_DIM), jnp.float32)
    feat_a = jax.random.normal(k_feat_a, (N, INPUT_DIM), jnp.float32)

    # symmetric binary adjacency with zero diagonal
    r = jax.random.uniform(k_adj, (N, N), jnp.float32)
    sym = (r + r.T) > 1.2
    eye = jnp.eye(N, dtype=jnp.float32)
    adj = sym.astype(jnp.float32) * (1.0 - eye)
    # SpaMI-style neighbourhood mask (self + neighbours), guarantees row_sum > 0
    graph_neigh = adj + eye

    params = init_params(k_param, INPUT_DIM, HIDDEN, OUT_DIM)

    emb, ret, ret_a = omics2_encoder_forward(params, feat, feat_a, adj, graph_neigh)
    jax.block_until_ready((emb, ret, ret_a))

    assert emb.shape == (N, OUT_DIM)
    assert ret.shape == (N, 2)
    assert ret_a.shape == (N, 2)
    assert bool(jnp.all(jnp.isfinite(emb)))
    assert bool(jnp.all(jnp.isfinite(ret)))
    assert bool(jnp.all(jnp.isfinite(ret_a)))
    print("KERNEL_OK")
</pallas_src>

<mosaic_0001>
module attributes {stable_mosaic.version = 11 : i64} {
  func.func @fused_forward_kernel(%arg0: i32, %arg1: memref<16x32xf32, #tpu.memory_space<vmem>>, %arg2: memref<16x32xf32, #tpu.memory_space<vmem>>, %arg3: memref<16x16xbf16, #tpu.memory_space<vmem>>, %arg4: memref<16x16xbf16, #tpu.memory_space<vmem>>, %arg5: memref<32x256xbf16, #tpu.memory_space<vmem>>, %arg6: memref<1x256xf32, #tpu.memory_space<vmem>>, %arg7: memref<256x32xbf16, #tpu.memory_space<vmem>>, %arg8: memref<1x32xf32, #tpu.memory_space<vmem>>, %arg9: memref<32x32xbf16, #tpu.memory_space<vmem>>, %arg10: memref<1x1xf32, #tpu.memory_space<smem>>, %arg11: memref<16x32xf32, #tpu.memory_space<vmem>>, %arg12: memref<16x4xf32, #tpu.memory_space<vmem>>) attributes {dimension_semantics = [#tpu.dimension_semantics<arbitrary>], iteration_bounds = array<i64: 1>, scalar_prefetch = 0 : i64, scratch_operands = 0 : i64, tpu.core_type = #tpu.core_type<tc>, window_params = [{pipeline_mode = #tpu.pipeline_mode<synchronous>, transform_indices = @transform_0, window_bounds = array<i64: 16, 32>}, {pipeline_mode = #tpu.pipeline_mode<synchronous>, transform_indices = @transform_1, window_bounds = array<i64: 16, 32>}, {pipeline_mode = #tpu.pipeline_mode<synchronous>, transform_indices = @transform_2, window_bounds = array<i64: 16, 16>}, {pipeline_mode = #tpu.pipeline_mode<synchronous>, transform_indices = @transform_3, window_bounds = array<i64: 16, 16>}, {pipeline_mode = #tpu.pipeline_mode<synchronous>, transform_indices = @transform_4, window_bounds = array<i64: 32, 256>}, {pipeline_mode = #tpu.pipeline_mode<synchronous>, transform_indices = @transform_5, window_bounds = array<i64: 1, 256>}, {pipeline_mode = #tpu.pipeline_mode<synchronous>, transform_indices = @transform_6, window_bounds = array<i64: 256, 32>}, {pipeline_mode = #tpu.pipeline_mode<synchronous>, transform_indices = @transform_7, window_bounds = array<i64: 1, 32>}, {pipeline_mode = #tpu.pipeline_mode<synchronous>, transform_indices = @transform_8, window_bounds = array<i64: 32, 32>}, {transform_indices = @transform_9, window_bounds = array<i64: 1, 1>}, {pipeline_mode = #tpu.pipeline_mode<synchronous>, transform_indices = @transform_10, window_bounds = array<i64: 16, 32>}, {pipeline_mode = #tpu.pipeline_mode<synchronous>, transform_indices = @transform_11, window_bounds = array<i64: 16, 4>}]} {
    %c0 = arith.constant 0 : index
    %c0_0 = arith.constant 0 : index
    %0 = vector.load %arg3[%c0, %c0_0] : memref<16x16xbf16, #tpu.memory_space<vmem>>, vector<16x16xbf16>
    %cst = arith.constant 1.000000e+00 : bf16
    %1 = vector.broadcast %cst : bf16 to vector<16x1xbf16>
    %cst_1 = arith.constant dense<0.000000e+00> : vector<16x1xf32>
    %2 = tpu.matmul %0, %1, %cst_1 {dimension_numbers = #tpu.dot_dimension_numbers<[1], [0], [0], [1], [0, 0, 1, 1], [], []>} : vector<16x16xbf16>, vector<16x1xbf16>, vector<16x1xf32> -> vector<16x1xf32>
    %cst_2 = arith.constant 1.000000e+00 : f32
    %3 = vector.broadcast %cst_2 : f32 to vector<16x1xf32>
    %4 = arith.addf %2, %3 : vector<16x1xf32>
    %5 = math.rsqrt %4 : vector<16x1xf32>
    %6 = arith.mulf %5, %5 : vector<16x1xf32>
    %c0_3 = arith.constant 0 : index
    %c0_4 = arith.constant 0 : index
    %7 = vector.load %arg5[%c0_3, %c0_4] : memref<32x256xbf16, #tpu.memory_space<vmem>>, vector<32x256xbf16>
    %c0_5 = arith.constant 0 : index
    %c0_6 = arith.constant 0 : index
    %8 = vector.load %arg6[%c0_5, %c0_6] : memref<1x256xf32, #tpu.memory_space<vmem>>, vector<1x256xf32>
    %c0_7 = arith.constant 0 : index
    %c0_8 = arith.constant 0 : index
    %9 = vector.load %arg1[%c0_7, %c0_8] : memref<16x32xf32, #tpu.memory_space<vmem>>, vector<16x32xf32>
    %c0_9 = arith.constant 0 : index
    %c0_10 = arith.constant 0 : index
    %10 = vector.load %arg2[%c0_9, %c0_10] : memref<16x32xf32, #tpu.memory_space<vmem>>, vector<16x32xf32>
    %11 = tpu.concatenate %9, %10 in 1 : vector<16x32xf32>, vector<16x32xf32> -> vector<16x64xf32>
    %12 = vector.broadcast %5 : vector<16x1xf32> to vector<16x64xf32>
    %13 = arith.mulf %12, %11 : vector<16x64xf32>
    %14 = arith.truncf %13 : vector<16x64xf32> to vector<16x64xbf16>
    %cst_11 = arith.constant dense<0.000000e+00> : vector<16x64xf32>
    %15 = tpu.matmul %0, %14, %cst_11 {dimension_numbers = #tpu.dot_dimension_numbers<[1], [0], [0], [1], [0, 0, 1, 1], [], []>} : vector<16x16xbf16>, vector<16x64xbf16>, vector<16x64xf32> -> vector<16x64xf32>
    %16 = vector.broadcast %5 : vector<16x1xf32> to vector<16x64xf32>
    %17 = arith.mulf %16, %15 : vector<16x64xf32>
    %18 = vector.broadcast %6 : vector<16x1xf32> to vector<16x64xf32>
    %19 = arith.mulf %18, %11 : vector<16x64xf32>
    %20 = arith.addf %17, %19 : vector<16x64xf32>
    %21 = vector.extract_strided_slice %20 {offsets = [0, 0], sizes = [16, 32], strides = [1, 1]} : vector<16x64xf32> to vector<16x32xf32>
    %22 = vector.extract_strided_slice %20 {offsets = [0, 32], sizes = [16, 32], strides = [1, 1]} : vector<16x64xf32> to vector<16x32xf32>
    %23 = tpu.concatenate %21, %22 in 0 : vector<16x32xf32>, vector<16x32xf32> -> vector<32x32xf32>
    %24 = arith.truncf %23 : vector<32x32xf32> to vector<32x32xbf16>
    %cst_12 = arith.constant dense<0.000000e+00> : vector<32x256xf32>
    %25 = tpu.matmul %24, %7, %cst_12 {dimension_numbers = #tpu.dot_dimension_numbers<[1], [0], [0], [1], [0, 0, 1, 1], [], []>} : vector<32x32xbf16>, vector<32x256xbf16>, vector<32x256xf32> -> vector<32x256xf32>
    %26 = vector.broadcast %8 : vector<1x256xf32> to vector<32x256xf32>
    %27 = arith.addf %25, %26 : vector<32x256xf32>
    %cst_13 = arith.constant 0.000000e+00 : f32
    %28 = vector.broadcast %cst_13 : f32 to vector<32x256xf32>
    %29 = arith.maximumf %27, %28 : vector<32x256xf32>
    %30 = arith.truncf %29 : vector<32x256xf32> to vector<32x256xbf16>
    %c0_14 = arith.constant 0 : index
    %c0_15 = arith.constant 0 : index
    %31 = vector.load %arg7[%c0_14, %c0_15] : memref<256x32xbf16, #tpu.memory_space<vmem>>, vector<256x32xbf16>
    %cst_16 = arith.constant dense<0.000000e+00> : vector<32x32xf32>
    %32 = tpu.matmul %30, %31, %cst_16 {dimension_numbers = #tpu.dot_dimension_numbers<[1], [0], [0], [1], [0, 0, 1, 1], [], []>} : vector<32x256xbf16>, vector<256x32xbf16>, vector<32x32xf32> -> vector<32x32xf32>
    %33 = vector.extract_strided_slice %32 {offsets = [0, 0], sizes = [16, 32], strides = [1, 1]} : vector<32x32xf32> to vector<16x32xf32>
    %34 = vector.extract_strided_slice %32 {offsets = [16, 0], sizes = [16, 32], strides = [1, 1]} : vector<32x32xf32> to vector<16x32xf32>
    %35 = tpu.concatenate %33, %34 in 1 : vector<16x32xf32>, vector<16x32xf32> -> vector<16x64xf32>
    %c0_17 = arith.constant 0 : index
    %c0_18 = arith.constant 0 : index
    %36 = vector.load %arg8[%c0_17, %c0_18] : memref<1x32xf32, #tpu.memory_space<vmem>>, vector<1x32xf32>
    %37 = vector.broadcast %5 : vector<16x1xf32> to vector<16x64xf32>
    %38 = arith.mulf %37, %35 : vector<16x64xf32>
    %39 = arith.truncf %38 : vector<16x64xf32> to vector<16x64xbf16>
    %cst_19 = arith.constant dense<0.000000e+00> : vector<16x64xf32>
    %40 = tpu.matmul %0, %39, %cst_19 {dimension_numbers = #tpu.dot_dimension_numbers<[1], [0], [0], [1], [0, 0, 1, 1], [], []>} : vector<16x16xbf16>, vector<16x64xbf16>, vector<16x64xf32> -> vector<16x64xf32>
    %41 = vector.broadcast %5 : vector<16x1xf32> to vector<16x64xf32>
    %42 = arith.mulf %41, %40 : vector<16x64xf32>
    %43 = vector.broadcast %6 : vector<16x1xf32> to vector<16x64xf32>
    %44 = arith.mulf %43, %35 : vector<16x64xf32>
    %45 = arith.addf %42, %44 : vector<16x64xf32>
    %46 = tpu.concatenate %36, %36 in 1 : vector<1x32xf32>, vector<1x32xf32> -> vector<1x64xf32>
    %47 = vector.broadcast %46 : vector<1x64xf32> to vector<16x64xf32>
    %48 = arith.addf %45, %47 : vector<16x64xf32>
    %49 = vector.extract_strided_slice %48 {offsets = [0, 0], sizes = [16, 32], strides = [1, 1]} : vector<16x64xf32> to vector<16x32xf32>
    %50 = vector.extract_strided_slice %48 {offsets = [0, 32], sizes = [16, 32], strides = [1, 1]} : vector<16x64xf32> to vector<16x32xf32>
    %c0_20 = arith.constant 0 : index
    %c0_21 = arith.constant 0 : index
    %51 = vector.load %arg11[%c0_20, %c0_21] : memref<16x32xf32, #tpu.memory_space<vmem>>, vector<16x32xf32>
    tpu.vector_store %arg11[%c0_20, %c0_21], %49 {strides = array<i32>} : memref<16x32xf32, #tpu.memory_space<vmem>>, vector<16x32xf32>,
    %c0_22 = arith.constant 0 : index
    %c0_23 = arith.constant 0 : index
    %52 = vector.load %arg4[%c0_22, %c0_23] : memref<16x16xbf16, #tpu.memory_space<vmem>>, vector<16x16xbf16>
    %53 = arith.truncf %48 : vector<16x64xf32> to vector<16x64xbf16>
    %cst_24 = arith.constant dense<0.000000e+00> : vector<16x64xf32>
    %54 = tpu.matmul %52, %53, %cst_24 {dimension_numbers = #tpu.dot_dimension_numbers<[1], [0], [0], [1], [0, 0, 1, 1], [], []>} : vector<16x16xbf16>, vector<16x64xbf16>, vector<16x64xf32> -> vector<16x64xf32>
    %55 = vector.extract_strided_slice %54 {offsets = [0, 0], sizes = [16, 32], strides = [1, 1]} : vector<16x64xf32> to vector<16x32xf32>
    %56 = arith.mulf %55, %55 : vector<16x32xf32>
    %cst_25 = arith.constant dense<0.000000e+00> : vector<16xf32>
    %57 = vector.multi_reduction <add>, %56, %cst_25 [1] : vector<16x32xf32> to vector<16xf32>
    %58 = vector.shape_cast %57 : vector<16xf32> to vector<16x1xf32>
    %cst_26 = arith.constant 1.000000e-24 : f32
    %59 = vector.broadcast %cst_26 : f32 to vector<16x1xf32>
    %60 = arith.maximumf %58, %59 : vector<16x1xf32>
    %61 = math.rsqrt %60 : vector<16x1xf32>
    %62 = vector.broadcast %61 : vector<16x1xf32> to vector<16x32xf32>
    %63 = arith.mulf %55, %62 : vector<16x32xf32>
    %64 = arith.negf %63 : vector<16x32xf32>
    %65 = math.exp %64 : vector<16x32xf32>
    %cst_27 = arith.constant 1.000000e+00 : f32
    %66 = vector.broadcast %cst_27 : f32 to vector<16x32xf32>
    %67 = arith.addf %66, %65 : vector<16x32xf32>
    %68 = arith.divf %66, %67 : vector<16x32xf32>
    %69 = vector.extract_strided_slice %54 {offsets = [0, 32], sizes = [16, 32], strides = [1, 1]} : vector<16x64xf32> to vector<16x32xf32>
    %70 = arith.mulf %69, %69 : vector<16x32xf32>
    %cst_28 = arith.constant dense<0.000000e+00> : vector<16xf32>
    %71 = vector.multi_reduction <add>, %70, %cst_28 [1] : vector<16x32xf32> to vector<16xf32>
    %72 = vector.shape_cast %71 : vector<16xf32> to vector<16x1xf32>
    %cst_29 = arith.constant 1.000000e-24 : f32
    %73 = vector.broadcast %cst_29 : f32 to vector<16x1xf32>
    %74 = arith.maximumf %72, %73 : vector<16x1xf32>
    %75 = math.rsqrt %74 : vector<16x1xf32>
    %76 = vector.broadcast %75 : vector<16x1xf32> to vector<16x32xf32>
    %77 = arith.mulf %69, %76 : vector<16x32xf32>
    %78 = arith.negf %77 : vector<16x32xf32>
    %79 = math.exp %78 : vector<16x32xf32>
    %cst_30 = arith.constant 1.000000e+00 : f32
    %80 = vector.broadcast %cst_30 : f32 to vector<16x32xf32>
    %81 = arith.addf %80, %79 : vector<16x32xf32>
    %82 = arith.divf %80, %81 : vector<16x32xf32>
    %83 = tpu.concatenate %68, %82 in 0 : vector<16x32xf32>, vector<16x32xf32> -> vector<32x32xf32>
    %84 = arith.truncf %83 : vector<32x32xf32> to vector<32x32xbf16>
    %c0_31 = arith.constant 0 : index
    %c0_32 = arith.constant 0 : index
    %85 = vector.load %arg9[%c0_31, %c0_32] : memref<32x32xbf16, #tpu.memory_space<vmem>>, vector<32x32xbf16>
    %cst_33 = arith.constant dense<0.000000e+00> : vector<32x32xf32>
    %86 = tpu.matmul %84, %85, %cst_33 {dimension_numbers = #tpu.dot_dimension_numbers<[1], [0], [0], [1], [0, 0, 1, 1], [], []>} : vector<32x32xbf16>, vector<32x32xbf16>, vector<32x32xf32> -> vector<32x32xf32>
    %87 = vector.extract_strided_slice %86 {offsets = [0, 0], sizes = [16, 32], strides = [1, 1]} : vector<32x32xf32> to vector<16x32xf32>
    %88 = vector.extract_strided_slice %86 {offsets = [16, 0], sizes = [16, 32], strides = [1, 1]} : vector<32x32xf32> to vector<16x32xf32>
    %c0_34 = arith.constant 0 : index
    %c0_35 = arith.constant 0 : index
    %89 = memref.load %arg10[%c0_34, %c0_35] : memref<1x1xf32, #tpu.memory_space<smem>>
    %90 = arith.mulf %49, %87 : vector<16x32xf32>
    %cst_36 = arith.constant dense<0.000000e+00> : vector<16xf32>
    %91 = vector.multi_reduction <add>, %90, %cst_36 [1] : vector<16x32xf32> to vector<16xf32>
    %92 = vector.shape_cast %91 : vector<16xf32> to vector<16x1xf32>
    %93 = vector.broadcast %89 : f32 to vector<16x1xf32>
    %94 = arith.addf %92, %93 : vector<16x1xf32>
    %95 = arith.mulf %50, %87 : vector<16x32xf32>
    %cst_37 = arith.constant dense<0.000000e+00> : vector<16xf32>
    %96 = vector.multi_reduction <add>, %95, %cst_37 [1] : vector<16x32xf32> to vector<16xf32>
    %97 = vector.shape_cast %96 : vector<16xf32> to vector<16x1xf32>
    %98 = vector.broadcast %89 : f32 to vector<16x1xf32>
    %99 = arith.addf %97, %98 : vector<16x1xf32>
    %100 = arith.mulf %50, %88 : vector<16x32xf32>
    %cst_38 = arith.constant dense<0.000000e+00> : vector<16xf32>
    %101 = vector.multi_reduction <add>, %100, %cst_38 [1] : vector<16x32xf32> to vector<16xf32>
    %102 = vector.shape_cast %101 : vector<16xf32> to vector<16x1xf32>
    %103 = vector.broadcast %89 : f32 to vector<16x1xf32>
    %104 = arith.addf %102, %103 : vector<16x1xf32>
    %105 = arith.mulf %49, %88 : vector<16x32xf32>
    %cst_39 = arith.constant dense<0.000000e+00> : vector<16xf32>
    %106 = vector.multi_reduction <add>, %105, %cst_39 [1] : vector<16x32xf32> to vector<16xf32>
    %107 = vector.shape_cast %106 : vector<16xf32> to vector<16x1xf32>
    %108 = vector.broadcast %89 : f32 to vector<16x1xf32>
    %109 = arith.addf %107, %108 : vector<16x1xf32>
    %110 = tpu.concatenate %94, %99, %104, %109 in 1 : vector<16x1xf32>, vector<16x1xf32>, vector<16x1xf32>, vector<16x1xf32> -> vector<16x4xf32>
    %c0_40 = arith.constant 0 : index
    %c0_41 = arith.constant 0 : index
    %111 = vector.load %arg12[%c0_40, %c0_41] : memref<16x4xf32, #tpu.memory_space<vmem>>, vector<16x4xf32>
    tpu.vector_store %arg12[%c0_40, %c0_41], %110 {strides = array<i32>} : memref<16x4xf32, #tpu.memory_space<vmem>>, vector<16x4xf32>,
    return
  }
  func.func @transform_0(%arg0: i32) -> (i32, i32) {
    %c0_i32 = arith.constant 0 : i32
    %c0_i32_0 = arith.constant 0 : i32
    %c0_i32_1 = arith.constant 0 : i32
    return %c0_i32, %c0_i32_0 : i32, i32
  }
  func.func @transform_1(%arg0: i32) -> (i32, i32) {
    %c0_i32 = arith.constant 0 : i32
    %c0_i32_0 = arith.constant 0 : i32
    %c0_i32_1 = arith.constant 0 : i32
    return %c0_i32, %c0_i32_0 : i32, i32
  }
  func.func @transform_2(%arg0: i32) -> (i32, i32) {
    %c0_i32 = arith.constant 0 : i32
    %c0_i32_0 = arith.constant 0 : i32
    %c0_i32_1 = arith.constant 0 : i32
    return %c0_i32, %c0_i32_0 : i32, i32
  }
  func.func @transform_3(%arg0: i32) -> (i32, i32) {
    %c0_i32 = arith.constant 0 : i32
    %c0_i32_0 = arith.constant 0 : i32
    %c0_i32_1 = arith.constant 0 : i32
    return %c0_i32, %c0_i32_0 : i32, i32
  }
  func.func @transform_4(%arg0: i32) -> (i32, i32) {
    %c0_i32 = arith.constant 0 : i32
    %c0_i32_0 = arith.constant 0 : i32
    %c0_i32_1 = arith.constant 0 : i32
    return %c0_i32, %c0_i32_0 : i32, i32
  }
  func.func @transform_5(%arg0: i32) -> (i32, i32) {
    %c0_i32 = arith.constant 0 : i32
    %c0_i32_0 = arith.constant 0 : i32
    %c0_i32_1 = arith.constant 0 : i32
    return %c0_i32, %c0_i32_0 : i32, i32
  }
  func.func @transform_6(%arg0: i32) -> (i32, i32) {
    %c0_i32 = arith.constant 0 : i32
    %c0_i32_0 = arith.constant 0 : i32
    %c0_i32_1 = arith.constant 0 : i32
    return %c0_i32, %c0_i32_0 : i32, i32
  }
  func.func @transform_7(%arg0: i32) -> (i32, i32) {
    %c0_i32 = arith.constant 0 : i32
    %c0_i32_0 = arith.constant 0 : i32
    %c0_i32_1 = arith.constant 0 : i32
    return %c0_i32, %c0_i32_0 : i32, i32
  }
  func.func @transform_8(%arg0: i32) -> (i32, i32) {
    %c0_i32 = arith.constant 0 : i32
    %c0_i32_0 = arith.constant 0 : i32
    %c0_i32_1 = arith.constant 0 : i32
    return %c0_i32, %c0_i32_0 : i32, i32
  }
  func.func @transform_9(%arg0: i32) -> (i32, i32) {
    %c0_i32 = arith.constant 0 : i32
    %c0_i32_0 = arith.constant 0 : i32
    %c0_i32_1 = arith.constant 0 : i32
    return %c0_i32, %c0_i32_0 : i32, i32
  }
  func.func @transform_10(%arg0: i32) -> (i32, i32) {
    %c0_i32 = arith.constant 0 : i32
    %c0_i32_0 = arith.constant 0 : i32
    %c0_i32_1 = arith.constant 0 : i32
    return %c0_i32, %c0_i32_0 : i32, i32
  }
  func.func @transform_11(%arg0: i32) -> (i32, i32) {
    %c0_i32 = arith.constant 0 : i32
    %c0_i32_0 = arith.constant 0 : i32
    %c0_i32_1 = arith.constant 0 : i32
    return %c0_i32, %c0_i32_0 : i32, i32
  }
}

</mosaic_0001>

<llo_original>
// kernel: tpu_custom_call.1
$region0: #{tpu_custom_call.1}
  #allocation0 [shape = 'u32[]', space=smem, size = 0x4, offset = 0x4, fixed_abs, tag = 'smem constant byte address 0x4 - core index']
  #allocation1 [shape = 'u32[144,128]{1,0:T(1,128)}', space=vmem, size = 0x12000, scoped, tag = 'internal scratch']
  #allocation2 [shape = 'f32[1,1]{1,0:T(1,128)S(6)}', space=smem, size = 0x200, scoped, tag = 'scoped memory for tpu_custom_call.1']
  %s0 = inlined_call_operand.hbm [shape: f32[16,32], index: 0, kind: input, shape index: {}]
  %s1 = inlined_call_operand.hbm [shape: f32[16,32], index: 1, kind: input, shape index: {}]
  %s2 = inlined_call_operand.hbm [shape: bf16[16,16], index: 2, kind: input, shape index: {}]
  %s3 = inlined_call_operand.hbm [shape: bf16[16,16], index: 3, kind: input, shape index: {}]
  %s4 = inlined_call_operand.hbm [shape: bf16[32,256], index: 4, kind: input, shape index: {}]
  %s5 = inlined_call_operand.hbm [shape: f32[1,256], index: 5, kind: input, shape index: {}]
  %s6 = inlined_call_operand.hbm [shape: bf16[256,32], index: 6, kind: input, shape index: {}]
  %s7 = inlined_call_operand.hbm [shape: f32[1,32], index: 7, kind: input, shape index: {}]
  %s8 = inlined_call_operand.hbm [shape: bf16[32,32], index: 8, kind: input, shape index: {}]
  %s9 = inlined_call_operand.<no memory space> [shape: f32[1,1], index: 9, kind: input, shape index: {}]
  %s10 = inlined_call_operand.hbm [shape: f32[16,32], index: 10, kind: output, shape index: {0}]
  %s11 = inlined_call_operand.hbm [shape: f32[16,4], index: 11, kind: output, shape index: {1}]
  %12 = xla_tuple %s10, %s11
  %s13 = sld [smem:[#allocation0]]
  $region94: #{tpu_custom_call.1} parent=0
    _
  %s15 = ssub.s32 1, %s13
  %s16 = scalar_select 0, %s15, %s13
  %17 = sst [smem:[#allocation2]] %s9
  $region1: #{tpu_custom_call.1} parent=0
    #allocation3 [shape = 'u8[8192]{0}', space=vmem, size = 0x2000, scoped, tag = 'input window, operand 0, single buffered']
    #allocation4 [shape = 's32[1]{0}', space=sflag, size = 0x4, scoped, tag = 'scoped memory for tpu_custom_call.1']
    #allocation5 [shape = 's32[1]{0}', space=sflag, size = 0x4, scoped, tag = 'scoped memory for tpu_custom_call.1']
    #allocation6 [shape = 'u8[8192]{0}', space=vmem, size = 0x2000, scoped, tag = 'input window, operand 1, single buffered']
    #allocation7 [shape = 's32[1]{0}', space=sflag, size = 0x4, scoped, tag = 'scoped memory for tpu_custom_call.1']
    #allocation8 [shape = 'u8[4096]{0}', space=vmem, size = 0x1000, scoped, tag = 'input window, operand 2, single buffered']
    #allocation9 [shape = 'u8[4096]{0}', space=vmem, size = 0x1000, scoped, tag = 'input window, operand 3, single buffered']
    #allocation10 [shape = 's32[1]{0}', space=sflag, size = 0x4, scoped, tag = 'scoped memory for tpu_custom_call.1']
    #allocation11 [shape = 'u8[16384]{0}', space=vmem, size = 0x4000, scoped, tag = 'input window, operand 4, single buffered']
    #allocation12 [shape = 'u8[1024]{0}', space=vmem, size = 0x400, scoped, tag = 'input window, operand 5, single buffered']
    #allocation13 [shape = 's32[1]{0}', space=sflag, size = 0x4, scoped, tag = 'scoped memory for tpu_custom_call.1']
    #allocation14 [shape = 'u8[65536]{0}', space=vmem, size = 0x10000, scoped, tag = 'input window, operand 6, single buffered']
    #allocation15 [shape = 'u8[512]{0}', space=vmem, size = 0x400, scoped, tag = 'input window, operand 7, single buffered']
    #allocation16 [shape = 's32[1]{0}', space=sflag, size = 0x4, scoped, tag = 'scoped memory for tpu_custom_call.1']
    #allocation17 [shape = 'u8[8192]{0}', space=vmem, size = 0x2000, scoped, tag = 'input window, operand 8, single buffered']
    #allocation18 [shape = 'u8[8192]{0}', space=vmem, size = 0x2000, scoped, tag = 'output window, operand 0, single buffered']
    #allocation19 [shape = 'u8[8192]{0}', space=vmem, size = 0x2000, scoped, tag = 'output window, operand 1, single buffered']
    #allocation20 [shape = 's32[1]{0}', space=sflag, size = 0x4, scoped, tag = 'scoped memory for tpu_custom_call.1']
    %18 = vsyncpa [#allocation4], 0
    %19 = vsyncpa [#allocation7], 0
    %20 = vsyncpa [#allocation10], 0
    %21 = vsyncpa [#allocation13], 0
    %22 = vsyncpa [#allocation16], 0
    %23 = vsyncpa [#allocation5], 0
    %24 = vsyncpa [#allocation20], 0
    // Predicated region
    $region2: #{tpu_custom_call.1} parent=1 // pred_check
      _
    $region3: #{tpu_custom_call.1} parent=1 // pred_check_branch
      %26 = sbr.rel (0) target = $region5
    $region4: #{tpu_custom_call.1} parent=1 // pred_region
      %s28 = ssub.s32 256, 256
      %29 = vsyncadd [#allocation4], %s28
      %s30 = sshll.u32 [#allocation3], 4
      %s31 = int_to_ptr.vmem [resolvable:$true] %s30
      %36 = dma.hbm_to_vmem [thread:$0]  %s0, 256, %s31, [#allocation4], 128, 128, 8
    $region5: #{tpu_custom_call.1} parent=1 // pred_fallthru
      _
    // Predicated region
    $region6: #{tpu_custom_call.1} parent=1 // pred_check
      _
    $region7: #{tpu_custom_call.1} parent=1 // pred_check_branch
      %38 = sbr.rel (0) target = $region9
    $region8: #{tpu_custom_call.1} parent=1 // pred_region
      %s40 = ssub.s32 256, 256
      %41 = vsyncadd [#allocation7], %s40
      %s42 = sshll.u32 [#allocation6], 4
      %s43 = int_to_ptr.vmem [resolvable:$true] %s42
      %48 = dma.hbm_to_vmem [thread:$0]  %s1, 256, %s43, [#allocation7], 128, 128, 8
    $region9: #{tpu_custom_call.1} parent=1 // pred_fallthru
      _
    // Predicated region
    $region10: #{tpu_custom_call.1} parent=1 // pred_check
      _
    $region11: #{tpu_custom_call.1} parent=1 // pred_check_branch
      %50 = sbr.rel (0) target = $region13
    $region12: #{tpu_custom_call.1} parent=1 // pred_region
      %s52 = ssub.s32 128, 128
      %53 = vsyncadd [#allocation7], %s52
      %s54 = sshll.u32 [#allocation8], 4
      %s55 = int_to_ptr.vmem [resolvable:$true] %s54
      %60 = dma.hbm_to_vmem [thread:$0]  %s2, 128, %s55, [#allocation7], 64, 64, 4
    $region13: #{tpu_custom_call.1} parent=1 // pred_fallthru
      _
    // Predicated region
    $region14: #{tpu_custom_call.1} parent=1 // pred_check
      _
    $region15: #{tpu_custom_call.1} parent=1 // pred_check_branch
      %62 = sbr.rel (0) target = $region17
    $region16: #{tpu_custom_call.1} parent=1 // pred_region
      %s64 = ssub.s32 128, 128
      %65 = vsyncadd [#allocation10], %s64
      %s66 = sshll.u32 [#allocation9], 4
      %s67 = int_to_ptr.vmem [resolvable:$true] %s66
      %72 = dma.hbm_to_vmem [thread:$0]  %s3, 128, %s67, [#allocation10], 64, 64, 4
    $region17: #{tpu_custom_call.1} parent=1 // pred_fallthru
      _
    // Predicated region
    $region18: #{tpu_custom_call.1} parent=1 // pred_check
      _
    $region19: #{tpu_custom_call.1} parent=1 // pred_check_branch
      %74 = sbr.rel (0) target = $region21
    $region20: #{tpu_custom_call.1} parent=1 // pred_region
      %s76 = ssub.s32 512, 512
      %77 = vsyncadd [#allocation10], %s76
      %s78 = sshll.u32 [#allocation11], 4
      %s79 = int_to_ptr.vmem [resolvable:$true] %s78
      %84 = dma.hbm_to_vmem [thread:$0]  %s4, 512, %s79, [#allocation10], 128, 128, 8
    $region21: #{tpu_custom_call.1} parent=1 // pred_fallthru
      _
    // Predicated region
    $region22: #{tpu_custom_call.1} parent=1 // pred_check
      _
    $region23: #{tpu_custom_call.1} parent=1 // pred_check_branch
      %86 = sbr.rel (0) target = $region25
    $region24: #{tpu_custom_call.1} parent=1 // pred_region
      %s88 = ssub.s32 32, 32
      %89 = vsyncadd [#allocation13], %s88
      %s91 = sshll.u32 [#allocation12], 4
      %s92 = int_to_ptr.vmem [resolvable:$true] %s91
      %94 = dma.hbm_to_vmem [thread:$0]  %s5, 32, %s92, [#allocation13]
    $region25: #{tpu_custom_call.1} parent=1 // pred_fallthru
      _
    // Predicated region
    $region26: #{tpu_custom_call.1} parent=1 // pred_check
      _
    $region27: #{tpu_custom_call.1} parent=1 // pred_check_branch
      %96 = sbr.rel (0) target = $region29
    $region28: #{tpu_custom_call.1} parent=1 // pred_region
      %s98 = ssub.s32 2048, 2048
      %99 = vsyncadd [#allocation13], %s98
      %s100 = sshll.u32 [#allocation14], 4
      %s101 = int_to_ptr.vmem [resolvable:$true] %s100
      %106 = dma.hbm_to_vmem [thread:$0]  %s6, 2048, %s101, [#allocation13], 64, 64, 4
    $region29: #{tpu_custom_call.1} parent=1 // pred_fallthru
      _
    // Predicated region
    $region30: #{tpu_custom_call.1} parent=1 // pred_check
      _
    $region31: #{tpu_custom_call.1} parent=1 // pred_check_branch
      %108 = sbr.rel (0) target = $region33
    $region32: #{tpu_custom_call.1} parent=1 // pred_region
      %s110 = ssub.s32 16, 16
      %111 = vsyncadd [#allocation16], %s110
      %s113 = sshll.u32 [#allocation15], 4
      %s114 = int_to_ptr.vmem [resolvable:$true] %s113
      %116 = dma.hbm_to_vmem [thread:$0]  %s7, 16, %s114, [#allocation16]
    $region33: #{tpu_custom_call.1} parent=1 // pred_fallthru
      _
    // Predicated region
    $region34: #{tpu_custom_call.1} parent=1 // pred_check
      _
    $region35: #{tpu_custom_call.1} parent=1 // pred_check_branch
      %118 = sbr.rel (0) target = $region37
    $region36: #{tpu_custom_call.1} parent=1 // pred_region
      %s120 = ssub.s32 256, 256
      %121 = vsyncadd [#allocation16], %s120
      %s122 = sshll.u32 [#allocation17], 4
      %s123 = int_to_ptr.vmem [resolvable:$true] %s122
      %128 = dma.hbm_to_vmem [thread:$0]  %s8, 256, %s123, [#allocation16], 64, 64, 4
    $region37: #{tpu_custom_call.1} parent=1 // pred_fallthru
      _
    // Predicated region
    $region38: #{tpu_custom_call.1} parent=1 // pred_check
      _
    $region39: #{tpu_custom_call.1} parent=1 // pred_check_branch
      %130 = sbr.rel (0) target = $region41
    $region40: #{tpu_custom_call.1} parent=1 // pred_region
      _
    $region41: #{tpu_custom_call.1} parent=1 // pred_fallthru
      _
    // Predicated region
    $region42: #{tpu_custom_call.1} parent=1 // pred_check
      _
    $region43: #{tpu_custom_call.1} parent=1 // pred_check_branch
      %132 = sbr.rel (0) target = $region45
    $region44: #{tpu_custom_call.1} parent=1 // pred_region
      %133 = dma.done [#allocation4], 256
    $region45: #{tpu_custom_call.1} parent=1 // pred_fallthru
      _
    // Predicated region
    $region46: #{tpu_custom_call.1} parent=1 // pred_check
      _
    $region47: #{tpu_custom_call.1} parent=1 // pred_check_branch
      %135 = sbr.rel (0) target = $region49
    $region48: #{tpu_custom_call.1} parent=1 // pred_region
      %136 = dma.done [#allocation7], 256
    $region49: #{tpu_custom_call.1} parent=1 // pred_fallthru
      _
    // Predicated region
    $region50: #{tpu_custom_call.1} parent=1 // pred_check
      _
    $region51: #{tpu_custom_call.1} parent=1 // pred_check_branch
      %138 = sbr.rel (0) target = $region53
    $region52: #{tpu_custom_call.1} parent=1 // pred_region
      %139 = dma.done [#allocation7], 128
    $region53: #{tpu_custom_call.1} parent=1 // pred_fallthru
      _
    // Predicated region
    $region54: #{tpu_custom_call.1} parent=1 // pred_check
      _
    $region55: #{tpu_custom_call.1} parent=1 // pred_check_branch
      %141 = sbr.rel (0) target = $region57
    $region56: #{tpu_custom_call.1} parent=1 // pred_region
      %142 = dma.done [#allocation10], 128
    $region57: #{tpu_custom_call.1} parent=1 // pred_fallthru
      _
    // Predicated region
    $region58: #{tpu_custom_call.1} parent=1 // pred_check
      _
    $region59: #{tpu_custom_call.1} parent=1 // pred_check_branch
      %144 = sbr.rel (0) target = $region61
    $region60: #{tpu_custom_call.1} parent=1 // pred_region
      %145 = dma.done [#allocation10], 512
    $region61: #{tpu_custom_call.1} parent=1 // pred_fallthru
      _
    // Predicated region
    $region62: #{tpu_custom_call.1} parent=1 // pred_check
      _
    $region63: #{tpu_custom_call.1} parent=1 // pred_check_branch
      %147 = sbr.rel (0) target = $region65
    $region64: #{tpu_custom_call.1} parent=1 // pred_region
      %148 = dma.done [#allocation13], 32
    $region65: #{tpu_custom_call.1} parent=1 // pred_fallthru
      _
    // Predicated region
    $region66: #{tpu_custom_call.1} parent=1 // pred_check
      _
    $region67: #{tpu_custom_call.1} parent=1 // pred_check_branch
      %150 = sbr.rel (0) target = $region69
    $region68: #{tpu_custom_call.1} parent=1 // pred_region
      %151 = dma.done [#allocation13], 2048
    $region69: #{tpu_custom_call.1} parent=1 // pred_fallthru
      _
    // Predicated region
    $region70: #{tpu_custom_call.1} parent=1 // pred_check
      _
    $region71: #{tpu_custom_call.1} parent=1 // pred_check_branch
      %153 = sbr.rel (0) target = $region73
    $region72: #{tpu_custom_call.1} parent=1 // pred_region
      %154 = dma.done [#allocation16], 16
    $region73: #{tpu_custom_call.1} parent=1 // pred_fallthru
      _
    // Predicated region
    $region74: #{tpu_custom_call.1} parent=1 // pred_check
      _
    $region75: #{tpu_custom_call.1} parent=1 // pred_check_branch
      %156 = sbr.rel (0) target = $region77
    $region76: #{tpu_custom_call.1} parent=1 // pred_region
      %157 = dma.done [#allocation16], 256
    $region77: #{tpu_custom_call.1} parent=1 // pred_fallthru
      _
    %v160 = vld [vmem:[#allocation8] sm:$0xf]
    %v161 = vld [vmem:[#allocation8 + $0x4] sm:$0xf]
    %v164 = vunpack.c.l.b16 %v160
    %v165 = vunpack.c.l.b16 %v161
    %v166 = vpack.c.b16 %v165, %v164
    %vm167 = vcmask 130048
    %v169 = vsel %vm167, %v166, 0
    %171 = vmatprep.subr.bf16.mxu0 0
    %172 = vmatpush1.bf16.msra.mxu0 1065369472
    %173 = vmatprep.subr.bf16.mxu0 0
    %174 = vmatpush1.bf16.msra.mxu0 0
    %175 = vmatprep.subr.bf16.mxu0 0
    %176 = vmatpush1.bf16.msra.mxu0 0
    %177 = vmatprep.subr.bf16.mxu0 0
    %178 = vmatpush1.bf16.msra.mxu0 0
    %179 = vmatprep.subr.bf16.mxu0 0
    %180 = vmatpush1.bf16.msra.mxu0 0
    %181 = vmatprep.subr.bf16.mxu0 0
    %182 = vmatpush1.bf16.msra.mxu0 0
    %183 = vmatprep.subr.bf16.mxu0 0
    %184 = vmatpush1.bf16.msra.mxu0 0
    %185 = vmatprep.subr.bf16.mxu0 0
    %186 = vmatpush1.bf16.msra.mxu0 0
    %187 = vmatprep.subr.bf16.mxu0 0
    %188 = vmatpush1.bf16.msra.mxu0 0
    %189 = vmatprep.subr.bf16.mxu0 0
    %190 = vmatpush1.bf16.msra.mxu0 0
    %191 = vmatprep.subr.bf16.mxu0 0
    %192 = vmatpush1.bf16.msra.mxu0 0
    %193 = vmatprep.subr.bf16.mxu0 0
    %194 = vmatpush1.bf16.msra.mxu0 0
    %195 = vmatprep.subr.bf16.mxu0 0
    %196 = vmatpush1.bf16.msra.mxu0 0
    %197 = vmatprep.subr.bf16.mxu0 0
    %198 = vmatpush1.bf16.msra.mxu0 0
    %199 = vmatprep.subr.bf16.mxu0 0
    %200 = vmatpush1.bf16.msra.mxu0 0
    %201 = vmatprep.subr.bf16.mxu0 0
    %202 = vmatpush1.bf16.msra.mxu0 0
    %203 = vmatprep.mubr.bf16.mxu0 0
    %204 = vmatmul.mubr.bf16.gmra.mrb[0].mxu0 %v169
    %v205 = vpop.f32.mrb[0].mxu0
    %v206 = vadd.f32 1.0, %v205
    %v207 = vpop.f32.mrb[0].mxu0
    %v208 = vpop.f32.mrb[0].mxu0
    %v209 = vadd.f32 1.0, %v208
    %v210 = vpop.f32.mrb[0].mxu0
    %211 = vdwg.mxu0
    %v212 = vrsqrt.pop %v206
    %v213 = vrsqrt.pop %v209
    %v214 = vmul.f32 %v212, %v212
    %v215 = vmul.f32 %v213, %v213
    %v216 = vld [vmem:[#allocation11] sm:$0xff]
    %v217 = vld [vmem:[#allocation11 + $0x8] sm:$0xff]
    %v218 = vld [vmem:[#allocation11 + $0x10] sm:$0xff]
    %v219 = vld [vmem:[#allocation11 + $0x18] sm:$0xff]
    %v220 = vld [vmem:[#allocation12] sm:$0x3]
    %v221 = vld [vmem:[#allocation3] sm:$0xff]
    %v222 = vld [vmem:[#allocation3 + $0x8] sm:$0xff]
    %v223 = vld [vmem:[#allocation6] sm:$0xff]
    %v224 = vld [vmem:[#allocation6 + $0x8] sm:$0xff]
    %227 = vrot.lane.b32.xlu0 %v223, 32
    %v228 = vpop.permute.xlu0 %227
    %229 = vrot.lane.b32.xlu0 %v224, 32
    %v230 = vpop.permute.xlu0 %229
    %vm233 = vcmask 261120
    %v234 = vsel %vm233, %v221, %v228
    %v235 = vsel %vm233, %v222, %v230
    %237 = vset.pattern.permute.xlu0 0
    %238 = vperm.xlu0 %237, %v212
    %v239 = vpop.permute.xlu0 %238
    %242 = vset.pattern.permute.xlu0 0
    %243 = vperm.xlu0 %242, %v213
    %v244 = vpop.permute.xlu0 %243
    %v246 = vmul.f32 %v239, %v234
    %v247 = vmul.f32 %v244, %v235
    %v248 = vpack.c.bf16 %v247, %v246
    %249 = vmatprep.subr.bf16.mxu0 0
    %250 = vmatpush1.bf16.msra.mxu0 %v248
    %251 = vmatprep.subr.bf16.mxu0 0
    %252 = vmatpush1.bf16.msra.mxu0 0
    %253 = vmatprep.subr.bf16.mxu0 0
    %254 = vmatpush1.bf16.msra.mxu0 0
    %255 = vmatprep.subr.bf16.mxu0 0
    %256 = vmatpush1.bf16.msra.mxu0 0
    %257 = vmatprep.subr.bf16.mxu0 0
    %258 = vmatpush1.bf16.msra.mxu0 0
    %259 = vmatprep.subr.bf16.mxu0 0
    %260 = vmatpush1.bf16.msra.mxu0 0
    %261 = vmatprep.subr.bf16.mxu0 0
    %262 = vmatpush1.bf16.msra.mxu0 0
    %263 = vmatprep.subr.bf16.mxu0 0
    %264 = vmatpush1.bf16.msra.mxu0 0
    %265 = vmatprep.subr.bf16.mxu0 0
    %266 = vmatpush1.bf16.msra.mxu0 0
    %267 = vmatprep.subr.bf16.mxu0 0
    %268 = vmatpush1.bf16.msra.mxu0 0
    %269 = vmatprep.subr.bf16.mxu0 0
    %270 = vmatpush1.bf16.msra.mxu0 0
    %271 = vmatprep.subr.bf16.mxu0 0
    %272 = vmatpush1.bf16.msra.mxu0 0
    %273 = vmatprep.subr.bf16.mxu0 0
    %274 = vmatpush1.bf16.msra.mxu0 0
    %275 = vmatprep.subr.bf16.mxu0 0
    %276 = vmatpush1.bf16.msra.mxu0 0
    %277 = vmatprep.subr.bf16.mxu0 0
    %278 = vmatpush1.bf16.msra.mxu0 0
    %279 = vmatprep.subr.bf16.mxu0 0
    %280 = vmatpush1.bf16.msra.mxu0 0
    %281 = vmatprep.mubr.bf16.mxu0 0
    %282 = vmatmul.mubr.bf16.gmra.mrb[0].mxu0 %v169
    %v283 = vpop.f32.mrb[0].mxu0
    %v284 = vadd.f32 0.0, %v283
    %v285 = vpop.f32.mrb[0].mxu0
    %v286 = vpop.f32.mrb[0].mxu0
    %v287 = vadd.f32 0.0, %v286
    %v288 = vpop.f32.mrb[0].mxu0
    %289 = vdwg.mxu0
    %v290 = vmul.f32 %v239, %v284
    %v291 = vmul.f32 %v244, %v287
    %293 = vset.pattern.permute.xlu0 0
    %294 = vperm.xlu0 %293, %v214
    %v295 = vpop.permute.xlu0 %294
    %298 = vset.pattern.permute.xlu0 0
    %299 = vperm.xlu0 %298, %v215
    %v300 = vpop.permute.xlu0 %299
    %v302 = vmul.f32 %v295, %v234
    %v303 = vmul.f32 %v300, %v235
    %v304 = vadd.f32 %v290, %v302
    %v305 = vadd.f32 %v291, %v303
    %308 = vrot.lane.b32.xlu0 %v304, 96
    %v309 = vpop.permute.xlu0 %308
    %310 = vrot.lane.b32.xlu0 %v305, 96
    %v311 = vpop.permute.xlu0 %310
    %v314 = vpack.c.bf16 %v305, %v304
    %v315 = vpack.c.bf16 %v311, %v309
    %v317 = vlaneseq
    %v318 = vshrl.u32 %v317, 7
    %v319 = vsub.s32 0, %v318
    %v320 = vrot.slane %v220, %v319
    %v321 = vlaneseq
    %v322 = vshrl.u32 %v321, 7
    %v323 = vsub.s32 1, %v322
    %v324 = vrot.slane %v220, %v323
    %v331 = vunpack.c.l.b16 %v216
    %v332 = vunpack.c.h.b16 %v216
    %v333 = vunpack.c.l.b16 %v217
    %v334 = vunpack.c.h.b16 %v217
    %v335 = vunpack.c.l.b16 %v218
    %v336 = vunpack.c.h.b16 %v218
    %v337 = vunpack.c.l.b16 %v219
    %v338 = vunpack.c.h.b16 %v219
    %v339 = vpack.c.b16 %v333, %v331
    %v340 = vpack.c.b16 %v334, %v332
    %v341 = vpack.c.b16 %v337, %v335
    %v342 = vpack.c.b16 %v338, %v336
    %v348 = vsel %vm233, %v314, 0
    %v351 = vsel %vm233, %v315, 0
    %353 = vmatprep.subr.bf16.mxu0 %v340
    %354 = vmatpush1.bf16.msra.mxu0 %v339
    %355 = vmatprep.subr.bf16.mxu0 %v342
    %356 = vmatpush1.bf16.msra.mxu0 %v341
    %357 = vmatprep.subr.bf16.mxu0 0
    %358 = vmatpush1.bf16.msra.mxu0 0
    %359 = vmatprep.subr.bf16.mxu0 0
    %360 = vmatpush1.bf16.msra.mxu0 0
    %361 = vmatprep.subr.bf16.mxu0 0
    %362 = vmatpush1.bf16.msra.mxu0 0
    %363 = vmatprep.subr.bf16.mxu0 0
    %364 = vmatpush1.bf16.msra.mxu0 0
    %365 = vmatprep.subr.bf16.mxu0 0
    %366 = vmatpush1.bf16.msra.mxu0 0
    %367 = vmatprep.subr.bf16.mxu0 0
    %368 = vmatpush1.bf16.msra.mxu0 0
    %369 = vmatprep.subr.bf16.mxu0 0
    %370 = vmatpush1.bf16.msra.mxu0 0
    %371 = vmatprep.subr.bf16.mxu0 0
    %372 = vmatpush1.bf16.msra.mxu0 0
    %373 = vmatprep.subr.bf16.mxu0 0
    %374 = vmatpush1.bf16.msra.mxu0 0
    %375 = vmatprep.subr.bf16.mxu0 0
    %376 = vmatpush1.bf16.msra.mxu0 0
    %377 = vmatprep.subr.bf16.mxu0 0
    %378 = vmatpush1.bf16.msra.mxu0 0
    %379 = vmatprep.subr.bf16.mxu0 0
    %380 = vmatpush1.bf16.msra.mxu0 0
    %381 = vmatprep.subr.bf16.mxu0 0
    %382 = vmatpush1.bf16.msra.mxu0 0
    %383 = vmatprep.subr.bf16.mxu0 0
    %384 = vmatpush1.bf16.msra.mxu0 0
    %385 = vmatprep.mubr.bf16.mxu0 0
    %386 = vmatmul.mubr.bf16.gmra.mrb[0].mxu0 %v348
    %v387 = vpop.f32.mrb[0].mxu0
    %v388 = vadd.f32 %v320, %v387
    %v389 = vpop.f32.mrb[0].mxu0
    %v390 = vadd.f32 %v324, %v389
    %v391 = vpop.f32.mrb[0].mxu0
    %v392 = vadd.f32 %v320, %v391
    %v393 = vpop.f32.mrb[0].mxu0
    %v394 = vadd.f32 %v324, %v393
    %395 = vmatprep.mubr.bf16.mxu0 0
    %396 = vmatmul.mubr.bf16.gmra.mrb[0].mxu0 %v351
    %v397 = vpop.f32.mrb[0].mxu0
    %v398 = vadd.f32 %v320, %v397
    %v399 = vpop.f32.mrb[0].mxu0
    %v400 = vadd.f32 %v324, %v399
    %v401 = vpop.f32.mrb[0].mxu0
    %v402 = vadd.f32 %v320, %v401
    %v403 = vpop.f32.mrb[0].mxu0
    %v404 = vadd.f32 %v324, %v403
    %405 = vdwg.mxu0
    %v406 = vmax.f32 %v388, 0.0
    %v407 = vmax.f32 %v390, 0.0
    %v408 = vmax.f32 %v392, 0.0
    %v409 = vmax.f32 %v394, 0.0
    %v410 = vmax.f32 %v398, 0.0
    %v411 = vmax.f32 %v400, 0.0
    %v412 = vmax.f32 %v402, 0.0
    %v413 = vmax.f32 %v404, 0.0
    %v414 = vpack.c.bf16 %v408, %v406
    %v415 = vpack.c.bf16 %v409, %v407
    %v416 = vpack.c.bf16 %v412, %v410
    %v417 = vpack.c.bf16 %v413, %v411
    %v418 = vld [vmem:[#allocation14] sm:$0xf]
    %v419 = vld [vmem:[#allocation14 + $0x4] sm:$0xf]
    %v420 = vld [vmem:[#allocation14 + $0x8] sm:$0xf]
    %v421 = vld [vmem:[#allocation14 + $0xc] sm:$0xf]
    %v422 = vld [vmem:[#allocation14 + $0x10] sm:$0xf]
    %v423 = vld [vmem:[#allocation14 + $0x14] sm:$0xf]
    %v424 = vld [vmem:[#allocation14 + $0x18] sm:$0xf]
    %v425 = vld [vmem:[#allocation14 + $0x1c] sm:$0xf]
    %v426 = vld [vmem:[#allocation14 + $0x20] sm:$0xf]
    %v427 = vld [vmem:[#allocation14 + $0x24] sm:$0xf]
    %v428 = vld [vmem:[#allocation14 + $0x28] sm:$0xf]
    %v429 = vld [vmem:[#allocation14 + $0x2c] sm:$0xf]
    %v430 = vld [vmem:[#allocation14 + $0x30] sm:$0xf]
    %v431 = vld [vmem:[#allocation14 + $0x34] sm:$0xf]
    %v432 = vld [vmem:[#allocation14 + $0x38] sm:$0xf]
    %v433 = vld [vmem:[#allocation14 + $0x3c] sm:$0xf]
    %v434 = vld [vmem:[#allocation14 + $0x40] sm:$0xf]
    %v435 = vld [vmem:[#allocation14 + $0x44] sm:$0xf]
    %v436 = vld [vmem:[#allocation14 + $0x48] sm:$0xf]
    %v437 = vld [vmem:[#allocation14 + $0x4c] sm:$0xf]
    %v438 = vld [vmem:[#allocation14 + $0x50] sm:$0xf]
    %v439 = vld [vmem:[#allocation14 + $0x54] sm:$0xf]
    %v440 = vld [vmem:[#allocation14 + $0x58] sm:$0xf]
    %v441 = vld [vmem:[#allocation14 + $0x5c] sm:$0xf]
    %v442 = vld [vmem:[#allocation14 + $0x60] sm:$0xf]
    %v443 = vld [vmem:[#allocation14 + $0x64] sm:$0xf]
    %v444 = vld [vmem:[#allocation14 + $0x68] sm:$0xf]
    %v445 = vld [vmem:[#allocation14 + $0x6c] sm:$0xf]
    %v446 = vld [vmem:[#allocation14 + $0x70] sm:$0xf]
    %v447 = vld [vmem:[#allocation14 + $0x74] sm:$0xf]
    %v448 = vld [vmem:[#allocation14 + $0x78] sm:$0xf]
    %v449 = vld [vmem:[#allocation14 + $0x7c] sm:$0xf]
    %v482 = vunpack.c.l.b16 %v418
    %v483 = vunpack.c.l.b16 %v419
    %v484 = vunpack.c.l.b16 %v420
    %v485 = vunpack.c.l.b16 %v421
    %v486 = vunpack.c.l.b16 %v422
    %v487 = vunpack.c.l.b16 %v423
    %v488 = vunpack.c.l.b16 %v424
    %v489 = vunpack.c.l.b16 %v425
    %v490 = vunpack.c.l.b16 %v426
    %v491 = vunpack.c.l.b16 %v427
    %v492 = vunpack.c.l.b16 %v428
    %v493 = vunpack.c.l.b16 %v429
    %v494 = vunpack.c.l.b16 %v430
    %v495 = vunpack.c.l.b16 %v431
    %v496 = vunpack.c.l.b16 %v432
    %v497 = vunpack.c.l.b16 %v433
    %v498 = vunpack.c.l.b16 %v434
    %v499 = vunpack.c.l.b16 %v435
    %v500 = vunpack.c.l.b16 %v436
    %v501 = vunpack.c.l.b16 %v437
    %v502 = vunpack.c.l.b16 %v438
    %v503 = vunpack.c.l.b16 %v439
    %v504 = vunpack.c.l.b16 %v440
    %v505 = vunpack.c.l.b16 %v441
    %v506 = vunpack.c.l.b16 %v442
    %v507 = vunpack.c.l.b16 %v443
    %v508 = vunpack.c.l.b16 %v444
    %v509 = vunpack.c.l.b16 %v445
    %v510 = vunpack.c.l.b16 %v446
    %v511 = vunpack.c.l.b16 %v447
    %v512 = vunpack.c.l.b16 %v448
    %v513 = vunpack.c.l.b16 %v449
    %v514 = vpack.c.b16 %v483, %v482
    %v515 = vpack.c.b16 %v485, %v484
    %v516 = vpack.c.b16 %v487, %v486
    %v517 = vpack.c.b16 %v489, %v488
    %v518 = vpack.c.b16 %v491, %v490
    %v519 = vpack.c.b16 %v493, %v492
    %v520 = vpack.c.b16 %v495, %v494
    %v521 = vpack.c.b16 %v497, %v496
    %v522 = vpack.c.b16 %v499, %v498
    %v523 = vpack.c.b16 %v501, %v500
    %v524 = vpack.c.b16 %v503, %v502
    %v525 = vpack.c.b16 %v505, %v504
    %v526 = vpack.c.b16 %v507, %v506
    %v527 = vpack.c.b16 %v509, %v508
    %v528 = vpack.c.b16 %v511, %v510
    %v529 = vpack.c.b16 %v513, %v512
    %546 = vmatprep.subr.bf16.mxu0 0
    %547 = vmatpush1.bf16.msra.mxu0 %v514
    %548 = vmatprep.subr.bf16.mxu0 0
    %549 = vmatpush1.bf16.msra.mxu0 %v515
    %550 = vmatprep.subr.bf16.mxu0 0
    %551 = vmatpush1.bf16.msra.mxu0 %v516
    %552 = vmatprep.subr.bf16.mxu0 0
    %553 = vmatpush1.bf16.msra.mxu0 %v517
    %554 = vmatprep.subr.bf16.mxu0 0
    %555 = vmatpush1.bf16.msra.mxu0 %v518
    %556 = vmatprep.subr.bf16.mxu0 0
    %557 = vmatpush1.bf16.msra.mxu0 %v519
    %558 = vmatprep.subr.bf16.mxu0 0
    %559 = vmatpush1.bf16.msra.mxu0 %v520
    %560 = vmatprep.subr.bf16.mxu0 0
    %561 = vmatpush1.bf16.msra.mxu0 %v521
    %562 = vmatprep.subr.bf16.mxu0 0
    %563 = vmatpush1.bf16.msra.mxu0 %v522
    %564 = vmatprep.subr.bf16.mxu0 0
    %565 = vmatpush1.bf16.msra.mxu0 %v523
    %566 = vmatprep.subr.bf16.mxu0 0
    %567 = vmatpush1.bf16.msra.mxu0 %v524
    %568 = vmatprep.subr.bf16.mxu0 0
    %569 = vmatpush1.bf16.msra.mxu0 %v525
    %570 = vmatprep.subr.bf16.mxu0 0
    %571 = vmatpush1.bf16.msra.mxu0 %v526
    %572 = vmatprep.subr.bf16.mxu0 0
    %573 = vmatpush1.bf16.msra.mxu0 %v527
    %574 = vmatprep.subr.bf16.mxu0 0
    %575 = vmatpush1.bf16.msra.mxu0 %v528
    %576 = vmatprep.subr.bf16.mxu0 0
    %577 = vmatpush1.bf16.msra.mxu0 %v529
    %578 = vmatprep.mubr.bf16.mxu0 %v415
    %579 = vmatmul.mubr.bf16.gmra.mrb[0].mxu0 %v414
    %v580 = vpop.f32.mrb[0].mxu0
    %v581 = vadd.f32 0.0, %v580
    %v582 = vpop.f32.mrb[0].mxu0
    %v583 = vpop.f32.mrb[0].mxu0
    %v584 = vadd.f32 0.0, %v583
    %v585 = vpop.f32.mrb[0].mxu0
    %586 = vmatprep.mubr.bf16.mxu0 %v417
    %587 = vmatmul.mubr.bf16.gmra.mrb[0].mxu0 %v416
    %v588 = vpop.f32.mrb[0].mxu0
    %v589 = vadd.f32 0.0, %v588
    %v590 = vpop.f32.mrb[0].mxu0
    %v591 = vpop.f32.mrb[0].mxu0
    %v592 = vadd.f32 0.0, %v591
    %v593 = vpop.f32.mrb[0].mxu0
    %594 = vdwg.mxu0
    %597 = vrot.lane.b32.xlu0 %v589, 32
    %v598 = vpop.permute.xlu0 %597
    %599 = vrot.lane.b32.xlu0 %v592, 32
    %v600 = vpop.permute.xlu0 %599
    %v603 = vsel %vm233, %v581, %v598
    %v604 = vsel %vm233, %v584, %v600
    %v605 = vld [vmem:[#allocation15] sm:$0x1]
    %v606 = vmul.f32 %v239, %v603
    %v607 = vmul.f32 %v244, %v604
    %v608 = vpack.c.bf16 %v607, %v606
    %609 = vmatprep.subr.bf16.mxu0 0
    %610 = vmatpush1.bf16.msra.mxu0 %v608
    %611 = vmatprep.subr.bf16.mxu0 0
    %612 = vmatpush1.bf16.msra.mxu0 0
    %613 = vmatprep.subr.bf16.mxu0 0
    %614 = vmatpush1.bf16.msra.mxu0 0
    %615 = vmatprep.subr.bf16.mxu0 0
    %616 = vmatpush1.bf16.msra.mxu0 0
    %617 = vmatprep.subr.bf16.mxu0 0
    %618 = vmatpush1.bf16.msra.mxu0 0
    %619 = vmatprep.subr.bf16.mxu0 0
    %620 = vmatpush1.bf16.msra.mxu0 0
    %621 = vmatprep.subr.bf16.mxu0 0
    %622 = vmatpush1.bf16.msra.mxu0 0
    %623 = vmatprep.subr.bf16.mxu0 0
    %624 = vmatpush1.bf16.msra.mxu0 0
    %625 = vmatprep.subr.bf16.mxu0 0
    %626 = vmatpush1.bf16.msra.mxu0 0
    %627 = vmatprep.subr.bf16.mxu0 0
    %628 = vmatpush1.bf16.msra.mxu0 0
    %629 = vmatprep.subr.bf16.mxu0 0
    %630 = vmatpush1.bf16.msra.mxu0 0
    %631 = vmatprep.subr.bf16.mxu0 0
    %632 = vmatpush1.bf16.msra.mxu0 0
    %633 = vmatprep.subr.bf16.mxu0 0
    %634 = vmatpush1.bf16.msra.mxu0 0
    %635 = vmatprep.subr.bf16.mxu0 0
    %636 = vmatpush1.bf16.msra.mxu0 0
    %637 = vmatprep.subr.bf16.mxu0 0
    %638 = vmatpush1.bf16.msra.mxu0 0
    %639 = vmatprep.subr.bf16.mxu0 0
    %640 = vmatpush1.bf16.msra.mxu0 0
    %641 = vmatprep.mubr.bf16.mxu0 0
    %642 = vmatmul.mubr.bf16.gmra.mrb[0].mxu0 %v169
    %v643 = vpop.f32.mrb[0].mxu0
    %v644 = vadd.f32 0.0, %v643
    %v645 = vpop.f32.mrb[0].mxu0
    %v646 = vpop.f32.mrb[0].mxu0
    %v647 = vadd.f32 0.0, %v646
    %v648 = vpop.f32.mrb[0].mxu0
    %649 = vdwg.mxu0
    %v650 = vmul.f32 %v239, %v644
    %v651 = vmul.f32 %v244, %v647
    %v652 = vmul.f32 %v295, %v603
    %v653 = vmul.f32 %v300, %v604
    %v654 = vadd.f32 %v650, %v652
    %v655 = vadd.f32 %v651, %v653
    %v657 = vlaneseq
    %v658 = vshrl.u32 %v657, 7
    %v659 = vsub.s32 0, %v658
    %v660 = vrot.slane %v605, %v659
    %661 = vrot.lane.b32.xlu0 %v660, 32
    %v662 = vpop.permute.xlu0 %661
    %v664 = vsel %vm233, %v605, %v662
    %v665 = vlaneseq
    %v666 = vshrl.u32 %v665, 7
    %v667 = vsub.s32 0, %v666
    %v668 = vrot.slane %v664, %v667
    %v669 = vadd.f32 %v654, %v668
    %v670 = vadd.f32 %v655, %v668
    %671 = vst.msk [vmem:[#allocation18] sm:$0xff] %vm233, %v669
    %672 = vst.msk [vmem:[#allocation18 + $0x8] sm:$0xff] %vm233, %v670
    %v673 = vld [vmem:[#allocation9] sm:$0xf]
    %v674 = vld [vmem:[#allocation9 + $0x4] sm:$0xf]
    %v675 = vpack.c.bf16 %v670, %v669
    %v678 = vunpack.c.l.b16 %v673
    %v679 = vunpack.c.l.b16 %v674
    %v680 = vpack.c.b16 %v679, %v678
    %v682 = vsel %vm167, %v680, 0
    %684 = vmatprep.subr.bf16.mxu0 0
    %685 = vmatpush1.bf16.msra.mxu0 %v675
    %686 = vmatprep.subr.bf16.mxu0 0
    %687 = vmatpush1.bf16.msra.mxu0 0
    %688 = vmatprep.subr.bf16.mxu0 0
    %689 = vmatpush1.bf16.msra.mxu0 0
    %690 = vmatprep.subr.bf16.mxu0 0
    %691 = vmatpush1.bf16.msra.mxu0 0
    %692 = vmatprep.subr.bf16.mxu0 0
    %693 = vmatpush1.bf16.msra.mxu0 0
    %694 = vmatprep.subr.bf16.mxu0 0
    %695 = vmatpush1.bf16.msra.mxu0 0
    %696 = vmatprep.subr.bf16.mxu0 0
    %697 = vmatpush1.bf16.msra.mxu0 0
    %698 = vmatprep.subr.bf16.mxu0 0
    %699 = vmatpush1.bf16.msra.mxu0 0
    %700 = vmatprep.subr.bf16.mxu0 0
    %701 = vmatpush1.bf16.msra.mxu0 0
    %702 = vmatprep.subr.bf16.mxu0 0
    %703 = vmatpush1.bf16.msra.mxu0 0
    %704 = vmatprep.subr.bf16.mxu0 0
    %705 = vmatpush1.bf16.msra.mxu0 0
    %706 = vmatprep.subr.bf16.mxu0 0
    %707 = vmatpush1.bf16.msra.mxu0 0
    %708 = vmatprep.subr.bf16.mxu0 0
    %709 = vmatpush1.bf16.msra.mxu0 0
    %710 = vmatprep.subr.bf16.mxu0 0
    %711 = vmatpush1.bf16.msra.mxu0 0
    %712 = vmatprep.subr.bf16.mxu0 0
    %713 = vmatpush1.bf16.msra.mxu0 0
    %714 = vmatprep.subr.bf16.mxu0 0
    %715 = vmatpush1.bf16.msra.mxu0 0
    %716 = vmatprep.mubr.bf16.mxu0 0
    %717 = vmatmul.mubr.bf16.gmra.mrb[0].mxu0 %v682
    %v718 = vpop.f32.mrb[0].mxu0
    %v719 = vadd.f32 0.0, %v718
    %v720 = vpop.f32.mrb[0].mxu0
    %v721 = vpop.f32.mrb[0].mxu0
    %v722 = vadd.f32 0.0, %v721
    %v723 = vpop.f32.mrb[0].mxu0
    %724 = vdwg.mxu0
    %v725 = vmul.f32 %v719, %v719
    %v726 = vmul.f32 %v722, %v722
    %v727 = vsel %vm233, %v725, 0.0
    %728 = vadd.xlane.f32.xlu0 %v727
    %v729 = vpop.xlane.xlu0 %728
    %v730 = vsel %vm233, %v726, 0.0
    %731 = vadd.xlane.f32.xlu0 %v730
    %v732 = vpop.xlane.xlu0 %731
    %v733 = vmax.f32 %v729, 1e-24
    %v734 = vmax.f32 %v732, 1e-24
    %v735 = vrsqrt.pop %v733
    %v736 = vrsqrt.pop %v734
    %v737 = vmul.f32 %v719, %v735
    %v738 = vmul.f32 %v722, %v736
    %v739 = vxor.u32 %v737, 2147483648
    %v740 = vxor.u32 %v738, 2147483648
    %v741 = vmul.f32 %v739, 1.442695
    %v742 = vpow.pop %v741
    %v743 = vmul.f32 %v740, 1.442695
    %v744 = vpow.pop %v743
    %v745 = vadd.f32 %v742, 1.0
    %v746 = vadd.f32 %v744, 1.0
    %v747 = vrcp.pop %v745
    %v748 = vmul.f32 1.0, %v747
    %v749 = vrcp.pop %v746
    %v750 = vmul.f32 1.0, %v749
    %753 = vrot.lane.b32.xlu0 %v725, 96
    %v754 = vpop.permute.xlu0 %753
    %755 = vrot.lane.b32.xlu0 %v726, 96
    %v756 = vpop.permute.xlu0 %755
    %v759 = vsel %vm233, %v754, 0.0
    %760 = vadd.xlane.f32.xlu0 %v759
    %v761 = vpop.xlane.xlu0 %760
    %v762 = vsel %vm233, %v756, 0.0
    %763 = vadd.xlane.f32.xlu0 %v762
    %v764 = vpop.xlane.xlu0 %763
    %v765 = vmax.f32 %v761, 1e-24
    %v766 = vmax.f32 %v764, 1e-24
    %v767 = vrsqrt.pop %v765
    %v768 = vrsqrt.pop %v766
    %v769 = vmul.f32 %v719, %v767
    %v770 = vmul.f32 %v722, %v768
    %v771 = vxor.u32 %v769, 2147483648
    %v772 = vxor.u32 %v770, 2147483648
    %v773 = vmul.f32 %v771, 1.442695
    %v774 = vpow.pop %v773
    %v775 = vmul.f32 %v772, 1.442695
    %v776 = vpow.pop %v775
    %v777 = vadd.f32 %v774, 1.0
    %v778 = vadd.f32 %v776, 1.0
    %v779 = vrcp.pop %v777
    %v780 = vmul.f32 1.0, %v779
    %v781 = vrcp.pop %v778
    %v782 = vmul.f32 1.0, %v781
    %785 = vrot.lane.b32.xlu0 %v780, 96
    %v786 = vpop.permute.xlu0 %785
    %787 = vrot.lane.b32.xlu0 %v782, 96
    %v788 = vpop.permute.xlu0 %787
    %v791 = vpack.c.bf16 %v750, %v748
    %v792 = vpack.c.bf16 %v788, %v786
    %v793 = vld [vmem:[#allocation17] sm:$0xf]
    %v794 = vld [vmem:[#allocation17 + $0x4] sm:$0xf]
    %v795 = vld [vmem:[#allocation17 + $0x8] sm:$0xf]
    %v796 = vld [vmem:[#allocation17 + $0xc] sm:$0xf]
    %v801 = vunpack.c.l.b16 %v793
    %v802 = vunpack.c.l.b16 %v794
    %v803 = vunpack.c.l.b16 %v795
    %v804 = vunpack.c.l.b16 %v796
    %v805 = vpack.c.b16 %v802, %v801
    %v806 = vpack.c.b16 %v804, %v803
    %v810 = vsel %vm233, %v791, 0
    %v813 = vsel %vm233, %v792, 0
    %815 = vmatprep.subr.bf16.mxu0 0
    %816 = vmatpush1.bf16.msra.mxu0 %v805
    %817 = vmatprep.subr.bf16.mxu0 0
    %818 = vmatpush1.bf16.msra.mxu0 %v806
    %819 = vmatprep.subr.bf16.mxu0 0
    %820 = vmatpush1.bf16.msra.mxu0 0
    %821 = vmatprep.subr.bf16.mxu0 0
    %822 = vmatpush1.bf16.msra.mxu0 0
    %823 = vmatprep.subr.bf16.mxu0 0
    %824 = vmatpush1.bf16.msra.mxu0 0
    %825 = vmatprep.subr.bf16.mxu0 0
    %826 = vmatpush1.bf16.msra.mxu0 0
    %827 = vmatprep.subr.bf16.mxu0 0
    %828 = vmatpush1.bf16.msra.mxu0 0
    %829 = vmatprep.subr.bf16.mxu0 0
    %830 = vmatpush1.bf16.msra.mxu0 0
    %831 = vmatprep.subr.bf16.mxu0 0
    %832 = vmatpush1.bf16.msra.mxu0 0
    %833 = vmatprep.subr.bf16.mxu0 0
    %834 = vmatpush1.bf16.msra.mxu0 0
    %835 = vmatprep.subr.bf16.mxu0 0
    %836 = vmatpush1.bf16.msra.mxu0 0
    %837 = vmatprep.subr.bf16.mxu0 0
    %838 = vmatpush1.bf16.msra.mxu0 0
    %839 = vmatprep.subr.bf16.mxu0 0
    %840 = vmatpush1.bf16.msra.mxu0 0
    %841 = vmatprep.subr.bf16.mxu0 0
    %842 = vmatpush1.bf16.msra.mxu0 0
    %843 = vmatprep.subr.bf16.mxu0 0
    %844 = vmatpush1.bf16.msra.mxu0 0
    %845 = vmatprep.subr.bf16.mxu0 0
    %846 = vmatpush1.bf16.msra.mxu0 0
    %847 = vmatprep.mubr.bf16.mxu0 0
    %848 = vmatmul.mubr.bf16.gmra.mrb[0].mxu0 %v810
    %v849 = vpop.f32.mrb[0].mxu0
    %v850 = vadd.f32 0.0, %v849
    %v851 = vpop.f32.mrb[0].mxu0
    %v852 = vpop.f32.mrb[0].mxu0
    %v853 = vadd.f32 0.0, %v852
    %v854 = vpop.f32.mrb[0].mxu0
    %855 = vmatprep.mubr.bf16.mxu0 0
    %856 = vmatmul.mubr.bf16.gmra.mrb[0].mxu0 %v813
    %v857 = vpop.f32.mrb[0].mxu0
    %v858 = vadd.f32 0.0, %v857
    %v859 = vpop.f32.mrb[0].mxu0
    %v860 = vpop.f32.mrb[0].mxu0
    %v861 = vadd.f32 0.0, %v860
    %v862 = vpop.f32.mrb[0].mxu0
    %863 = vdwg.mxu0
    %s864 = sld [smem:[#allocation2]]
    %v865 = vmul.f32 %v669, %v850
    %v866 = vmul.f32 %v670, %v853
    %v867 = vsel %vm233, %v865, 0.0
    %868 = vadd.xlane.f32.xlu0 %v867
    %v869 = vpop.xlane.xlu0 %868
    %v870 = vsel %vm233, %v866, 0.0
    %871 = vadd.xlane.f32.xlu0 %v870
    %v872 = vpop.xlane.xlu0 %871
    %v873 = vstv %s864
    %v874 = vadd.f32 %v869, %v873
    %v875 = vadd.f32 %v872, %v873
    %878 = vrot.lane.b32.xlu0 %v850, 32
    %v879 = vpop.permute.xlu0 %878
    %880 = vrot.lane.b32.xlu0 %v853, 32
    %v881 = vpop.permute.xlu0 %880
    %v884 = vmul.f32 %v669, %v879
    %v885 = vmul.f32 %v670, %v881
    %888 = vrot.lane.b32.xlu0 %v884, 96
    %v889 = vpop.permute.xlu0 %888
    %890 = vrot.lane.b32.xlu0 %v885, 96
    %v891 = vpop.permute.xlu0 %890
    %v894 = vsel %vm233, %v889, 0.0
    %895 = vadd.xlane.f32.xlu0 %v894
    %v896 = vpop.xlane.xlu0 %895
    %v897 = vsel %vm233, %v891, 0.0
    %898 = vadd.xlane.f32.xlu0 %v897
    %v899 = vpop.xlane.xlu0 %898
    %v900 = vadd.f32 %v896, %v873
    %v901 = vadd.f32 %v899, %v873
    %904 = vrot.lane.b32.xlu0 %v858, 32
    %v905 = vpop.permute.xlu0 %904
    %906 = vrot.lane.b32.xlu0 %v861, 32
    %v907 = vpop.permute.xlu0 %906
    %v910 = vmul.f32 %v669, %v905
    %v911 = vmul.f32 %v670, %v907
    %914 = vrot.lane.b32.xlu0 %v910, 96
    %v915 = vpop.permute.xlu0 %914
    %916 = vrot.lane.b32.xlu0 %v911, 96
    %v917 = vpop.permute.xlu0 %916
    %v920 = vsel %vm233, %v915, 0.0
    %921 = vadd.xlane.f32.xlu0 %v920
    %v922 = vpop.xlane.xlu0 %921
    %v923 = vsel %vm233, %v917, 0.0
    %924 = vadd.xlane.f32.xlu0 %v923
    %v925 = vpop.xlane.xlu0 %924
    %v926 = vadd.f32 %v922, %v873
    %v927 = vadd.f32 %v925, %v873
    %v928 = vmul.f32 %v669, %v858
    %v929 = vmul.f32 %v670, %v861
    %v930 = vsel %vm233, %v928, 0.0
    %931 = vadd.xlane.f32.xlu0 %v930
    %v932 = vpop.xlane.xlu0 %931
    %v933 = vsel %vm233, %v929, 0.0
    %934 = vadd.xlane.f32.xlu0 %v933
    %v935 = vpop.xlane.xlu0 %934
    %v936 = vadd.f32 %v932, %v873
    %v937 = vadd.f32 %v935, %v873
    %vm938 = vcmask 7168
    %v939 = vsel %vm938, %v874, %v900
    %v940 = vsel %vm938, %v875, %v901
    %vm941 = vcmask 15360
    %v942 = vsel %vm941, %v939, %v926
    %v943 = vsel %vm941, %v940, %v927
    %vm944 = vcmask 23552
    %v945 = vsel %vm944, %v942, %v936
    %v946 = vsel %vm944, %v943, %v937
    %vm947 = vcmask 31744
    %948 = vst.msk [vmem:[#allocation19] sm:$0xff] %vm947, %v945
    %949 = vst.msk [vmem:[#allocation19 + $0x8] sm:$0xff] %vm947, %v946
    // Predicated region
    $region78: #{tpu_custom_call.1} parent=1 // pred_check
      _
    $region79: #{tpu_custom_call.1} parent=1 // pred_check_branch
      %951 = sbr.rel (0) target = $region81
    $region80: #{tpu_custom_call.1} parent=1 // pred_region
      %s953 = ssub.s32 256, 256
      %954 = vsyncadd [#allocation5], %s953
      %s955 = sshll.u32 [#allocation18], 4
      %s956 = int_to_ptr.vmem [resolvable:$true] %s955
      %961 = dma.vmem_to_hbm [thread:$0]  %s956, 256, %s10, [#allocation5], 128, 128, 8
    $region81: #{tpu_custom_call.1} parent=1 // pred_fallthru
      _
    // Predicated region
    $region82: #{tpu_custom_call.1} parent=1 // pred_check
      _
    $region83: #{tpu_custom_call.1} parent=1 // pred_check_branch
      %963 = sbr.rel (0) target = $region85
    $region84: #{tpu_custom_call.1} parent=1 // pred_region
      %s965 = ssub.s32 256, 256
      %966 = vsyncadd [#allocation20], %s965
      %s967 = sshll.u32 [#allocation19], 4
      %s968 = int_to_ptr.vmem [resolvable:$true] %s967
      %973 = dma.vmem_to_hbm [thread:$0]  %s968, 256, %s11, [#allocation20], 128, 128, 8
    $region85: #{tpu_custom_call.1} parent=1 // pred_fallthru
      _
    // Predicated region
    $region86: #{tpu_custom_call.1} parent=1 // pred_check
      _
    $region87: #{tpu_custom_call.1} parent=1 // pred_check_branch
      %975 = sbr.rel (0) target = $region89
    $region88: #{tpu_custom_call.1} parent=1 // pred_region
      %976 = dma.done [#allocation5], 256
    $region89: #{tpu_custom_call.1} parent=1 // pred_fallthru
      _
    // Predicated region
    $region90: #{tpu_custom_call.1} parent=1 // pred_check
      _
    $region91: #{tpu_custom_call.1} parent=1 // pred_check_branch
      %978 = sbr.rel (0) target = $region93
    $region92: #{tpu_custom_call.1} parent=1 // pred_region
      %979 = dma.done [#allocation20], 256
    $region93: #{tpu_custom_call.1} parent=1 // pred_fallthru
      _
    %980 = vsyncpa [#allocation4], 1
    %981 = vsyncpa [#allocation7], 1
    %982 = vsyncpa [#allocation10], 1
    %983 = vsyncpa [#allocation13], 1
    %984 = vsyncpa [#allocation16], 1
    %985 = vsyncpa [#allocation5], 1
    %986 = vsyncpa [#allocation20], 1

</llo_original>
